<compile_context>
chip_gen: v6e
topology: v6e:2x2x1
jax: 0.10.0
libtpu: 0.0.40
codegen_flags: <defaults>
</compile_context>

<pallas_src>
import functools

import jax
import jax.numpy as jnp
import numpy as np
from jax.experimental import pallas as pl
from jax.experimental.pallas import tpu as pltpu

EPS = 1e-5


# --------------------------------------------------------------------------------------
# Kernels
# --------------------------------------------------------------------------------------

def _norm_relu_matmul(x, wt, o_ref, scale, shift, matmul_dtype):
    """Shared tail: affine instance-norm -> ReLU -> (Cout,Cin)@(Cin,T) MXU matmul -> store."""
    xr = jnp.maximum(x * scale + shift, 0.0)          # VPU, f32
    if matmul_dtype is not None:
        xr = xr.astype(matmul_dtype)                   # weight is already pre-cast in wrapper
    y = jnp.dot(wt, xr, preferred_element_type=jnp.float32)   # (Cout, T), MXU
    o_ref[...] = y.astype(o_ref.dtype)                 # wide, lane-dense store


def transition_kernel_fused_stats(x_ref, wt_ref, o_ref, *, matmul_dtype=None):
    """Single-spatial-tile path: the x tile covers all of H*W, so the InstanceNorm
    statistics are computed in-kernel from the resident tile (lane reductions on the
    otherwise idle XLU). x is read from HBM exactly once."""
    x = x_ref[...].astype(jnp.float32)                               # (Cin, HW)
    mean = jnp.mean(x, axis=-1, keepdims=True)                       # (Cin, 1)
    var = jnp.mean(jnp.square(x - mean), axis=-1, keepdims=True)     # biased, as PyTorch IN
    scale = jax.lax.rsqrt(var + EPS)
    shift = -mean * scale
    _norm_relu_matmul(x, wt_ref[...], o_ref, scale, shift, matmul_dtype)


def transition_kernel_prestats(x_ref, wt_ref, scale_ref, shift_ref, o_ref, *,
                               matmul_dtype=None):
    """Multi-spatial-tile fallback: per-(n, channel) scale/shift precomputed by a single
    fused XLA pass, so the kernel has no cross-tile reduction."""
    x = x_ref[...].astype(jnp.float32)                               # (Cin, T)
    _norm_relu_matmul(x, wt_ref[...], o_ref, scale_ref[...], shift_ref[...], matmul_dtype)


# --------------------------------------------------------------------------------------
# Wrapper helpers
# --------------------------------------------------------------------------------------

def _vmem_caps():
    """(tile_budget_bytes, vmem_limit_cap_bytes) for this part.
    v5e/v6e have 128 MiB VMEM per TensorCore; v7x has 64 MiB (leave ~16 MiB headroom)."""
    cap = None
    try:
        info = pltpu.get_tpu_info()
        for attr in ("vmem_capacity_bytes", "vmem_size_bytes", "vmem_bytes"):
            cap = getattr(info, attr, None)
            if cap:
                break
    except Exception:
        cap = None
    if not cap:
        cap = 64 * 1024 * 1024                       # assume the smallest (v7x) if unknown
    if cap >= 100 * 1024 * 1024:                     # 128 MiB parts (v5e / v6e)
        return 80 * 1024 * 1024, 100 * 1024 * 1024
    return 36 * 1024 * 1024, 48 * 1024 * 1024        # v7x-safe


def _bytes_per_lane(cin, cout, x_itemsize, out_itemsize, use_lowprec_mm):
    """Per-spatial-lane VMEM bytes: double-buffered in/out tiles + in-kernel f32
    temporaries (x upcast, normalized/relu'd activations, f32 matmul result) + optional
    bf16 copy of the MXU activation input."""
    b = 2 * x_itemsize * cin + 2 * out_itemsize * cout   # double-buffered DMA tiles
    b += 4 * (2 * cin + cout)                            # f32 elementwise temporaries + y
    if use_lowprec_mm:
        b += 2 * cin                                     # bf16 activation copy for the MXU
    return b


def _choose_spatial_tile(hw, bytes_per_lane, tile_budget, min_blocks=1):
    """Returns (tile, n_blocks, padded_hw). Single full-extent tile when it fits (enables
    in-kernel stats fusion); otherwise a 128-multiple tile that exactly divides the
    zero-padded extent (full, unmasked blocks)."""
    max_lanes = max(128, tile_budget // max(1, bytes_per_lane))
    if min_blocks <= 1 and hw <= max_lanes:
        return hw, 1, hw
    hw_pad = pl.cdiv(hw, 128) * 128
    m = hw_pad // 128
    max_k = max(1, min(m, max_lanes // 128))
    if min_blocks > 1:
        max_k = max(1, min(max_k, m // min_blocks))
    k = max_k
    while k > 1 and m % k != 0:
        k -= 1
    t = 128 * k
    return t, hw_pad // t, hw_pad


# --------------------------------------------------------------------------------------
# Public entry point
# --------------------------------------------------------------------------------------

def transition_block(x, weight, drop_rate=0.0, training=False,
                     spatial_tile=None, matmul_dtype="auto", min_spatial_blocks=1):
    """x: (N, Cin, H, W); weight: ConvTranspose2d weight (Cin, Cout, 1, 1), bias-free."""
    if drop_rate > 0.0 and training:
        # TODO(synk): training-mode dropout needs pltpu.prng_seed / prng_random_bits in-kernel.
        raise NotImplementedError("training-mode dropout (drop_rate > 0) not implemented")
    # drop_rate > 0 with training=False is F.dropout's eval path -> identity.

    n, cin, h, w = x.shape
    cout = weight.shape[1]
    hw = h * w
    out_dtype = x.dtype

    # bf16 MXU inputs only where the matmul could become the critical unit.
    if matmul_dtype == "auto":
        matmul_dtype = jnp.bfloat16 if min(cin, cout) >= 128 else None
    w_dtype = jnp.float32 if matmul_dtype is None else matmul_dtype
    wt = weight[:, :, 0, 0].T.astype(w_dtype)        # (Cout, Cin), cast once (stationary)

    # Wrapper-side flatten: lane-dense (N, Cin, H*W), metadata only.
    xf = x.reshape(n, cin, hw)

    tile_budget, vmem_cap = _vmem_caps()
    bpl = _bytes_per_lane(cin, cout, xf.dtype.itemsize, jnp.dtype(out_dtype).itemsize,
                          matmul_dtype is not None)

    if spatial_tile is None:
        t, n_spatial, hw_pad = _choose_spatial_tile(hw, bpl, tile_budget,
                                                    min_blocks=min_spatial_blocks)
    else:
        t = int(spatial_tile)
        if t != hw and (t <= 0 or t % 128 != 0):
            raise ValueError(
                f"spatial_tile must equal H*W ({hw}) or be a multiple of 128, got {t}")
        if t == hw:
            n_spatial, hw_pad = 1, hw
        else:
            hw_pad = pl.cdiv(hw, t) * t
            n_spatial = hw_pad // t

    # Explicit scoped-VMEM limit: tile working set + stationary weight + stats, with headroom.
    working = (bpl * t
               + 2 * wt.dtype.itemsize * cout * cin
               + 4 * 4 * cin
               + (4 << 20))
    vmem_limit = int(min(vmem_cap, max(32 * 1024 * 1024, working)))

    fuse_stats = (n_spatial == 1 and hw_pad == hw and t == hw)

    if fuse_stats:
        # --- single-tile path: stats computed in-kernel, x read from HBM once ---
        kern = functools.partial(transition_kernel_fused_stats, matmul_dtype=matmul_dtype)
        y = pl.pallas_call(
            kern,
            out_shape=jax.ShapeDtypeStruct((n, cout, hw), out_dtype),
            grid_spec=pltpu.PrefetchScalarGridSpec(
                num_scalar_prefetch=0,
                grid=(n,),
                in_specs=[
                    pl.BlockSpec((None, cin, hw), lambda b: (b, 0, 0)),   # x tile
                    pl.BlockSpec((cout, cin), lambda b: (0, 0)),          # weight (stationary)
                ],
                out_specs=pl.BlockSpec((None, cout, hw), lambda b: (b, 0, 0)),
            ),
            compiler_params=pltpu.CompilerParams(
                dimension_semantics=("parallel",),
                vmem_limit_bytes=vmem_limit,
            ),
        )(xf, wt)
    else:
        # --- multi-tile fallback: single-pass stats pre-pass (one extra read of x) ---
        x32 = xf.astype(jnp.float32)
        mean = jnp.mean(x32, axis=-1, keepdims=True)                     # (N, Cin, 1)
        ex2 = jnp.mean(jnp.square(x32), axis=-1, keepdims=True)          # fuses with mean pass
        var = jnp.maximum(ex2 - jnp.square(mean), 0.0)                   # biased, as IN
        scale = jax.lax.rsqrt(var + EPS)
        shift = -mean * scale

        # Zero-pad the spatial extent so every grid step is a full, unmasked block.
        xf_in = xf if hw_pad == hw else jnp.pad(xf, ((0, 0), (0, 0), (0, hw_pad - hw)))

        kern = functools.partial(transition_kernel_prestats, matmul_dtype=matmul_dtype)
        y = pl.pallas_call(
            kern,
            out_shape=jax.ShapeDtypeStruct((n, cout, hw_pad), out_dtype),
            grid_spec=pltpu.PrefetchScalarGridSpec(
                num_scalar_prefetch=0,
                grid=(n, n_spatial),
                in_specs=[
                    pl.BlockSpec((None, cin, t), lambda b, s: (b, 0, s)),   # x tile
                    pl.BlockSpec((cout, cin), lambda b, s: (0, 0)),         # weight
                    pl.BlockSpec((None, cin, 1), lambda b, s: (b, 0, 0)),   # scale
                    pl.BlockSpec((None, cin, 1), lambda b, s: (b, 0, 0)),   # shift
                ],
                out_specs=pl.BlockSpec((None, cout, t), lambda b, s: (b, 0, s)),
            ),
            compiler_params=pltpu.CompilerParams(
                dimension_semantics=("parallel", "parallel"),
                vmem_limit_bytes=vmem_limit,
            ),
        )(xf_in, wt, scale, shift)
        if hw_pad != hw:
            y = y[:, :, :hw]

    # Nearest-neighbor upsample x2: pure duplication -> wrapper broadcast + reshape.
    # TODO(synk): fuse into the kernel once Mosaic handles the minor-dim interleave/reshape.
    y = y.reshape(n, cout, h, 1, w, 1)
    y = jnp.broadcast_to(y, (n, cout, h, 2, w, 2)).reshape(n, cout, 2 * h, 2 * w)
    return y


# --------------------------------------------------------------------------------------
# Pure-JAX reference (mirrors the PyTorch forward, eval / drop_rate==0 path)
# --------------------------------------------------------------------------------------

def reference(x, weight):
    mean = jnp.mean(x, axis=(2, 3), keepdims=True)
    var = jnp.mean((x - mean) ** 2, axis=(2, 3), keepdims=True)
    xn = (x - mean) / jnp.sqrt(var + EPS)
    xr = jnp.maximum(xn, 0.0)
    w2 = weight[:, :, 0, 0]                                  # (Cin, Cout)
    y = jnp.einsum("nihw,io->nohw", xr, w2)
    y = jnp.repeat(jnp.repeat(y, 2, axis=2), 2, axis=3)
    return y


if __name__ == "__main__":
    key = jax.random.PRNGKey(0)
    kx, kw, kx2 = jax.random.split(key, 3)

    N, Cin, Cout, H, W = 2, 4, 8, 16, 16
    x = jax.random.normal(kx, (N, Cin, H, W), dtype=jnp.float32)
    # ConvTranspose2d weight shape: (in_planes, out_planes, 1, 1)
    weight = 0.1 * jax.random.normal(kw, (Cin, Cout, 1, 1), dtype=jnp.float32)

    ref = reference(x, weight)

    # Default: whole spatial extent in one tile -> fused in-kernel IN stats, grid (N,).
    out = jax.block_until_ready(transition_block(x, weight, drop_rate=0.0))
    np.testing.assert_allclose(np.asarray(out), np.asarray(ref), rtol=1e-4, atol=1e-4)
    assert out.shape == (N, Cout, 2 * H, 2 * W)

    # Forced 128-lane spatial tiling -> multi-tile fallback (single-pass pre-stats), grid (N, 2).
    out2 = jax.block_until_ready(
        transition_block(x, weight, drop_rate=0.0, spatial_tile=128))
    np.testing.assert_allclose(np.asarray(out2), np.asarray(ref), rtol=1e-4, atol=1e-4)

    # Non-multiple-of-128 spatial extent forced through the multi-tile path -> exercises the
    # zero-padding (full unmasked blocks) + slice-back.
    H2 = W2 = 12
    x2 = jax.random.normal(kx2, (N, Cin, H2, W2), dtype=jnp.float32)
    ref2 = reference(x2, weight)
    out3 = jax.block_until_ready(
        transition_block(x2, weight, drop_rate=0.0, spatial_tile=128))
    np.testing.assert_allclose(np.asarray(out3), np.asarray(ref2), rtol=1e-4, atol=1e-4)

    print("KERNEL_OK")
</pallas_src>

<mosaic_0001>
module attributes {stable_mosaic.version = 11 : i64} {
  func.func @transition_kernel_fused_stats(%arg0: i32, %arg1: memref<1x4x256xf32, #tpu.memory_space<vmem>>, %arg2: memref<8x4xf32, #tpu.memory_space<vmem>>, %arg3: memref<1x8x256xf32, #tpu.memory_space<vmem>>) attributes {dimension_semantics = [#tpu.dimension_semantics<parallel>], iteration_bounds = array<i64: 2>, scalar_prefetch = 0 : i64, scratch_operands = 0 : i64, tpu.core_type = #tpu.core_type<tc>, window_params = [{transform_indices = @transform_0, window_bounds = array<i64: 1, 4, 256>}, {pipeline_mode = #tpu.pipeline_mode<synchronous>, transform_indices = @transform_1, window_bounds = array<i64: 8, 4>}, {transform_indices = @transform_2, window_bounds = array<i64: 1, 8, 256>}]} {
    %c0 = arith.constant 0 : index
    %c0_0 = arith.constant 0 : index
    %c0_1 = arith.constant 0 : index
    %0 = vector.load %arg1[%c0, %c0_0, %c0_1] : memref<1x4x256xf32, #tpu.memory_space<vmem>>, vector<1x4x256xf32>
    %1 = vector.shape_cast %0 : vector<1x4x256xf32> to vector<4x256xf32>
    %cst = arith.constant dense<0.000000e+00> : vector<4xf32>
    %2 = vector.multi_reduction <add>, %1, %cst [1] : vector<4x256xf32> to vector<4xf32>
    %3 = vector.shape_cast %2 : vector<4xf32> to vector<4x1xf32>
    %cst_2 = arith.constant 2.560000e+02 : f32
    %4 = vector.broadcast %cst_2 : f32 to vector<4x1xf32>
    %5 = arith.divf %3, %4 : vector<4x1xf32>
    %6 = vector.broadcast %5 : vector<4x1xf32> to vector<4x256xf32>
    %7 = arith.subf %1, %6 : vector<4x256xf32>
    %8 = arith.mulf %7, %7 : vector<4x256xf32>
    %cst_3 = arith.constant dense<0.000000e+00> : vector<4xf32>
    %9 = vector.multi_reduction <add>, %8, %cst_3 [1] : vector<4x256xf32> to vector<4xf32>
    %10 = vector.shape_cast %9 : vector<4xf32> to vector<4x1xf32>
    %cst_4 = arith.constant 2.560000e+02 : f32
    %11 = vector.broadcast %cst_4 : f32 to vector<4x1xf32>
    %12 = arith.divf %10, %11 : vector<4x1xf32>
    %cst_5 = arith.constant 9.99999974E-6 : f32
    %13 = vector.broadcast %cst_5 : f32 to vector<4x1xf32>
    %14 = arith.addf %12, %13 : vector<4x1xf32>
    %15 = math.rsqrt %14 : vector<4x1xf32>
    %cst_6 = arith.constant 0.000000e+00 : f32
    %16 = vector.broadcast %cst_6 : f32 to vector<4x1xf32>
    %17 = arith.subf %16, %5 : vector<4x1xf32>
    %18 = arith.mulf %17, %15 : vector<4x1xf32>
    %c0_7 = arith.constant 0 : index
    %c0_8 = arith.constant 0 : index
    %19 = vector.load %arg2[%c0_7, %c0_8] : memref<8x4xf32, #tpu.memory_space<vmem>>, vector<8x4xf32>
    %20 = vector.broadcast %15 : vector<4x1xf32> to vector<4x256xf32>
    %21 = arith.mulf %1, %20 : vector<4x256xf32>
    %22 = vector.broadcast %18 : vector<4x1xf32> to vector<4x256xf32>
    %23 = arith.addf %21, %22 : vector<4x256xf32>
    %cst_9 = arith.constant 0.000000e+00 : f32
    %24 = vector.broadcast %cst_9 : f32 to vector<4x256xf32>
    %25 = arith.maximumf %23, %24 : vector<4x256xf32>
    %cst_10 = arith.constant dense<0.000000e+00> : vector<8x256xf32>
    %26 = tpu.matmul %19, %25, %cst_10 {dimension_numbers = #tpu.dot_dimension_numbers<[1], [0], [0], [1], [0, 0, 1, 1], [], []>} : vector<8x4xf32>, vector<4x256xf32>, vector<8x256xf32> -> vector<8x256xf32>
    %c0_11 = arith.constant 0 : index
    %c0_12 = arith.constant 0 : index
    %c0_13 = arith.constant 0 : index
    %27 = vector.load %arg3[%c0_11, %c0_12, %c0_13] : memref<1x8x256xf32, #tpu.memory_space<vmem>>, vector<1x8x256xf32>
    %28 = vector.shape_cast %27 : vector<1x8x256xf32> to vector<8x256xf32>
    %29 = vector.shape_cast %26 : vector<8x256xf32> to vector<1x8x256xf32>
    tpu.vector_store %arg3[%c0_11, %c0_12, %c0_13], %29 {strides = array<i32>} : memref<1x8x256xf32, #tpu.memory_space<vmem>>, vector<1x8x256xf32>,
    return
  }
  func.func @transform_0(%arg0: i32) -> (i32, i32, i32) {
    %c0_i32 = arith.constant 0 : i32
    %c0_i32_0 = arith.constant 0 : i32
    %c0_i32_1 = arith.constant 0 : i32
    return %arg0, %c0_i32, %c0_i32_0 : i32, i32, i32
  }
  func.func @transform_1(%arg0: i32) -> (i32, i32) {
    %c0_i32 = arith.constant 0 : i32
    %c0_i32_0 = arith.constant 0 : i32
    %c0_i32_1 = arith.constant 0 : i32
    return %c0_i32, %c0_i32_0 : i32, i32
  }
  func.func @transform_2(%arg0: i32) -> (i32, i32, i32) {
    %c0_i32 = arith.constant 0 : i32
    %c0_i32_0 = arith.constant 0 : i32
    %c0_i32_1 = arith.constant 0 : i32
    return %arg0, %c0_i32, %c0_i32_0 : i32, i32, i32
  }
}

</mosaic_0001>

<llo_original>
// kernel: tpu_custom_call.1
$region0: #{tpu_custom_call.1}
  #allocation0 [shape = 'u32[]', space=smem, size = 0x4, offset = 0x4, fixed_abs, tag = 'smem constant byte address 0x4 - core index']
  #allocation1 [shape = 'u32[144,128]{1,0:T(1,128)}', space=vmem, size = 0x12000, scoped, tag = 'internal scratch']
  %s0 = inlined_call_operand.hbm [shape: f32[2,4,256], index: 0, kind: input, shape index: {}]
  %s1 = inlined_call_operand.vmem [shape: f32[8,4], index: 1, kind: input, shape index: {}]
  %s2 = inlined_call_operand.hbm [shape: f32[2,8,256], index: 2, kind: output, shape index: {}]
  %s3 = sld [smem:[#allocation0]]
  $region45: #{tpu_custom_call.1} parent=0
    _
  %s5 = ssub.s32 1, %s3
  %s6 = scalar_select 0, %s5, %s3
  $region1: #{tpu_custom_call.1} parent=0
    #allocation2 [shape = 'u8[8192]{0}', space=vmem, size = 0x2000, scoped, tag = 'input window, operand 0']
    #allocation3 [shape = 's32[2]{0}', space=sflag, size = 0x8, scoped, tag = 'scoped memory for tpu_custom_call.1']
    #allocation4 [shape = 's32[2]{0}', space=sflag, size = 0x8, scoped, tag = 'scoped memory for tpu_custom_call.1']
    #allocation5 [shape = 'u8[16384]{0}', space=vmem, size = 0x4000, scoped, tag = 'output window, operand 0']
    %7 = vsyncpa [#allocation3], 0
    %s8 = scalar_lea.sflag [#allocation3], 1
    %9 = vsyncpa %s8, 0
    %10 = vsyncpa [#allocation4], 0
    %s11 = scalar_lea.sflag [#allocation4], 1
    %12 = vsyncpa %s11, 0
    loop: start=0, step=1, limit=4
    $region2: #{tpu_custom_call.1} parent=1 // loop_pre_header
      _
    $region3: #{tpu_custom_call.1} parent=1 // loop_header
      %s14 = sphi 0, %s18
      %p15 = scmp.ge.s32.totalorder %s14, 4
      %s24 = sphi 0, %s26
      %s27 = sphi 0, %s24
      %s28 = sphi 0, %s27
      %s44 = sphi 0, %s28
      %s48 = sphi 0, %s48
      %s50 = sphi 0, %s48
      %s51 = sphi 0, %s50
      %s65 = sphi 0, %s51
      %s71 = sphi 0, %s73
      %s74 = sphi 0, %s71
      %s75 = sphi 0, %s74
      %s91 = sphi 0, %s75
    $region4: #{tpu_custom_call.1} parent=1 // loop_header_branch
      %17 = sbr.rel (%p15) target = $region8
    $region5: #{tpu_custom_call.1} parent=1 // loop_body
      %s19 = ssub.s32 %s14, 1
      %s20 = ssub.s32 %s14, 2
      %s21 = sadd.s32 %s14, 1
      %s22 = ssub.s32 %s14, %s21
      %p23 = scmp.eq.s32.totalorder %s22, 0
      %s25 = sadd.s32 %s24, 1
      %s26 = scalar_select %p23, %s24, %s25
      %p29 = pneg %p23
      %p30 = scmp.eq.s32.totalorder %s14, 1
      %p31 = por %p29, %p30
      %p32 = scmp.ne.s32.totalorder %s24, %s27
      %p33 = scmp.eq.s32.totalorder %s14, 0
      %p34 = por %p32, %p33
      %p35 = scmp.ne.s32.totalorder %s24, %s27
      %p36 = scmp.eq.s32.totalorder %s19, 1
      %p37 = por %p35, %p36
      %p38 = scmp.ne.s32.totalorder %s27, %s28
      %p39 = scmp.eq.s32.totalorder %s19, 0
      %p40 = por %p38, %p39
      %p41 = scmp.ne.s32.totalorder %s27, %s28
      %p42 = scmp.eq.s32.totalorder %s20, 1
      %p43 = por %p41, %p42
      %p45 = scmp.ne.s32.totalorder %s28, %s44
      %p46 = scmp.eq.s32.totalorder %s20, 0
      %p47 = por %p45, %p46
      %s49 = sadd.s32 %s48, 1
      %p52 = scmp.eq.s32.totalorder %s14, 1
      %p53 = scmp.ne.s32.totalorder %s48, %s50
      %p54 = scmp.eq.s32.totalorder %s14, 0
      %p55 = por %p53, %p54
      %p56 = scmp.ne.s32.totalorder %s48, %s50
      %p57 = scmp.eq.s32.totalorder %s19, 1
      %p58 = por %p56, %p57
      %p59 = scmp.ne.s32.totalorder %s50, %s51
      %p60 = scmp.eq.s32.totalorder %s19, 0
      %p61 = por %p59, %p60
      %p62 = scmp.ne.s32.totalorder %s50, %s51
      %p63 = scmp.eq.s32.totalorder %s20, 1
      %p64 = por %p62, %p63
      %p66 = scmp.ne.s32.totalorder %s51, %s65
      %p67 = scmp.eq.s32.totalorder %s20, 0
      %p68 = por %p66, %p67
      %s69 = ssub.s32 %s14, %s21
      %p70 = scmp.eq.s32.totalorder %s69, 0
      %s72 = sadd.s32 %s71, 1
      %s73 = scalar_select %p70, %s71, %s72
      %p76 = pneg %p70
      %p77 = scmp.eq.s32.totalorder %s14, 1
      %p78 = por %p76, %p77
      %p79 = scmp.ne.s32.totalorder %s71, %s74
      %p80 = scmp.eq.s32.totalorder %s14, 0
      %p81 = por %p79, %p80
      %p82 = scmp.ne.s32.totalorder %s71, %s74
      %p83 = scmp.eq.s32.totalorder %s19, 1
      %p84 = por %p82, %p83
      %p85 = scmp.ne.s32.totalorder %s74, %s75
      %p86 = scmp.eq.s32.totalorder %s19, 0
      %p87 = por %p85, %p86
      %p88 = scmp.ne.s32.totalorder %s74, %s75
      %p89 = scmp.eq.s32.totalorder %s20, 1
      %p90 = por %p88, %p89
      %p92 = scmp.ne.s32.totalorder %s75, %s91
      %p93 = scmp.eq.s32.totalorder %s20, 0
      %p94 = por %p92, %p93
      %p95 = scmp.le.s32.totalorder 1, %s14
      %p96 = scmp.lt.s32.totalorder %s14, 3
      %p97 = pnand %p95, %p96
      %p98 = pneg %p97
      // Predicated region
      $region9: #{tpu_custom_call.1} parent=5 // pred_check
        _
      $region10: #{tpu_custom_call.1} parent=5 // pred_check_branch
        %100 = sbr.rel (%p97) target = $region12
      $region11: #{tpu_custom_call.1} parent=5 // pred_region
        %s101 = ssub.s32 %s14, 1
        // Predicated region
        $region13: #{tpu_custom_call.1} parent=11 // pred_check
          %p102 = pneg %p61
        $region14: #{tpu_custom_call.1} parent=11 // pred_check_branch
          %104 = sbr.rel (%p102) target = $region16
        $region15: #{tpu_custom_call.1} parent=11 // pred_region
          _
        $region16: #{tpu_custom_call.1} parent=11 // pred_fallthru
          _
      $region12: #{tpu_custom_call.1} parent=5 // pred_fallthru
        _
      %p105 = scmp.lt.s32.totalorder %s14, 2
      // Predicated region
      $region17: #{tpu_custom_call.1} parent=5 // pred_check
        %p106 = pneg %p105
      $region18: #{tpu_custom_call.1} parent=5 // pred_check_branch
        %108 = sbr.rel (%p106) target = $region20
      $region19: #{tpu_custom_call.1} parent=5 // pred_region
        // Predicated region
        $region21: #{tpu_custom_call.1} parent=19 // pred_check
          %p109 = pneg %p34
        $region22: #{tpu_custom_call.1} parent=19 // pred_check_branch
          %111 = sbr.rel (%p109) target = $region24
        $region23: #{tpu_custom_call.1} parent=19 // pred_region
          %s112 = sand.u32 %s24, 1
          %s113 = scalar_lea.sflag [#allocation3], %s112
          %s114 = sand.u32 %s24, 1
          %s115 = smul.addr %s114, 8
          %s116 = scalar_lea.vmem [#allocation2], %s115
          %s118 = ssub.s32 128, 128
          %119 = vsyncadd %s113, %s118
          %s120 = smul.addr %s14, 2
          %s121 = smul.addr %s120, 64
          %s122 = scalar_lea.hbm %s0, %s121
          %s124 = sshll.u32 %s116, 4
          %s125 = int_to_ptr.vmem [resolvable:$true] %s124
          %127 = dma.hbm_to_vmem [thread:$0]  %s122, 128, %s125, %s113
        $region24: #{tpu_custom_call.1} parent=19 // pred_fallthru
          _
      $region20: #{tpu_custom_call.1} parent=5 // pred_fallthru
        _
      %p128 = scmp.le.s32.totalorder 1, %s14
      %p129 = scmp.lt.s32.totalorder %s14, 3
      %p130 = pnand %p128, %p129
      %p131 = pneg %p130
      // Predicated region
      $region25: #{tpu_custom_call.1} parent=5 // pred_check
        _
      $region26: #{tpu_custom_call.1} parent=5 // pred_check_branch
        %133 = sbr.rel (%p130) target = $region28
      $region27: #{tpu_custom_call.1} parent=5 // pred_region
        %s134 = ssub.s32 %s14, 1
        %s135 = sand.u32 %s27, 1
        %s136 = scalar_lea.sflag [#allocation3], %s135
        %s137 = sand.u32 %s27, 1
        %s138 = smul.addr %s137, 8
        %s139 = scalar_lea.vmem [#allocation2], %s138
        // Predicated region
        $region29: #{tpu_custom_call.1} parent=27 // pred_check
          %p140 = pneg %p40
        $region30: #{tpu_custom_call.1} parent=27 // pred_check_branch
          %142 = sbr.rel (%p140) target = $region32
        $region31: #{tpu_custom_call.1} parent=27 // pred_region
          %143 = dma.done %s136, 128
        $region32: #{tpu_custom_call.1} parent=27 // pred_fallthru
          _
        %s144 = sand.u32 %s27, 1
        %s145 = scalar_lea.sflag [#allocation3], %s144
        %s146 = sand.u32 %s27, 1
        %s147 = smul.addr %s146, 8
        %s148 = scalar_lea.vmem [#allocation2], %s147
        %p149 = pneg %p40
        %p150 = pneg %p37
        %p151 = pneg %p61
        %p152 = pneg %p58
        %p153 = pneg %p87
        %p154 = pneg %p84
        %s155 = sand.u32 %s74, 1
        %s156 = scalar_lea.sflag [#allocation4], %s155
        %s157 = sand.u32 %s74, 1
        %s158 = smul.addr %s157, 16
        %s159 = scalar_lea.vmem [#allocation5], %s158
        %v160 = vld [vmem:[%s139] sm:$0xff]
        %v162 = vcombine.high %v160, %v160
        %vm164 = vcmask 1043456
        %v165 = vsel %vm164, %v160, 0.0
        %v166 = vsel %vm164, %v162, 0.0
        %v167 = vadd.f32 %v165, %v166
        %168 = vadd.xlane.f32.xlu0 %v167
        %v169 = vpop.xlane.xlu0 %168
        %v170 = vrcp.pop 256.0
        %v171 = vmul.f32 %v169, %v170
        %v174 = vunpack.c.l.s4 839922192
        %v175 = vunpack.c.0.s8 %v174
        %v176 = vlaneseq
        %v177 = vshrl.u32 %v176, 7
        %v178 = vsub.s32 %v175, %v177
        %v179 = vrot.slane %v171, %v178
        %v181 = vsub.f32 %v160, %v179
        %v182 = vmul.f32 %v181, %v181
        %v184 = vcombine.high %v182, %v182
        %v186 = vsel %vm164, %v182, 0.0
        %v187 = vsel %vm164, %v184, 0.0
        %v188 = vadd.f32 %v186, %v187
        %189 = vadd.xlane.f32.xlu0 %v188
        %v190 = vpop.xlane.xlu0 %189
        %v191 = vmul.f32 %v190, %v170
        %v192 = vadd.f32 %v191, 1e-05
        %v193 = vrsqrt.pop %v192
        %v194 = vsub.f32 0.0, %v171
        %v195 = vmul.f32 %v194, %v193
        %v196 = vld [vmem:[%s1] sm:$0xff]
        %v199 = vunpack.c.l.s4 839922192
        %v200 = vunpack.c.0.s8 %v199
        %v201 = vlaneseq
        %v202 = vshrl.u32 %v201, 7
        %v203 = vsub.s32 %v200, %v202
        %v204 = vrot.slane %v193, %v203
        %v206 = vmul.f32 %v160, %v204
        %v209 = vunpack.c.l.s4 839922192
        %v210 = vunpack.c.0.s8 %v209
        %v211 = vlaneseq
        %v212 = vshrl.u32 %v211, 7
        %v213 = vsub.s32 %v210, %v212
        %v214 = vrot.slane %v195, %v213
        %v216 = vadd.f32 %v206, %v214
        %v217 = vmax.f32 %v216, 0.0
        %v219 = vcombine.high %v217, %v217
        %vm220 = vcmask 31744
        %v222 = vsel %vm220, %v196, 0
        %v224 = vsel %vm164, %v217, 0
        %v226 = vsel %vm164, %v219, 0
        %228 = vmatprep.subr.mxu0 0.0
        %229 = vmatpush1.msra.mxu0 0.0
        %230 = vmatprep.subr.mxu0 0.0
        %231 = vmatpush1.msra.mxu0 0.0
        %232 = vmatprep.subr.mxu0 0.0
        %233 = vmatpush1.msra.mxu0 0.0
        %234 = vmatprep.subr.mxu0 0.0
        %235 = vmatpush1.msra.mxu0 0.0
        %236 = vmatprep.subr.mxu0 0.0
        %237 = vmatpush1.msra.mxu0 0.0
        %238 = vmatprep.subr.mxu0 0.0
        %239 = vmatpush1.msra.mxu0 0.0
        %240 = vmatprep.subr.mxu0 0.0
        %241 = vmatpush1.msra.mxu0 0.0
        %242 = vmatprep.subr.mxu0 0.0
        %243 = vmatpush1.msra.mxu0 0.0
        %244 = vmatprep.subr.mxu0 0.0
        %245 = vmatpush1.msra.mxu0 0.0
        %246 = vmatprep.subr.mxu0 0.0
        %247 = vmatpush1.msra.mxu0 0.0
        %248 = vmatprep.subr.mxu0 0.0
        %249 = vmatpush1.msra.mxu0 0.0
        %250 = vmatprep.subr.mxu0 0.0
        %251 = vmatpush1.msra.mxu0 0.0
        %252 = vmatprep.subr.mxu0 0.0
        %253 = vmatpush1.msra.mxu0 0.0
        %254 = vmatprep.subr.mxu0 0.0
        %255 = vmatpush1.msra.mxu0 0.0
        %256 = vmatprep.subr.mxu0 0.0
        %257 = vmatpush1.msra.mxu0 0.0
        %258 = vmatprep.subr.mxu0 %v226
        %259 = vmatpush1.msra.mxu0 %v224
        %260 = vmatprep.subr.mxu0 0.0
        %261 = vmatpush2.msra.mxu0 0.0
        %262 = vmatprep.subr.mxu0 0.0
        %263 = vmatpush2.msra.mxu0 0.0
        %264 = vmatprep.subr.mxu0 0.0
        %265 = vmatpush2.msra.mxu0 0.0
        %266 = vmatprep.subr.mxu0 0.0
        %267 = vmatpush2.msra.mxu0 0.0
        %268 = vmatprep.subr.mxu0 0.0
        %269 = vmatpush2.msra.mxu0 0.0
        %270 = vmatprep.subr.mxu0 0.0
        %271 = vmatpush2.msra.mxu0 0.0
        %272 = vmatprep.subr.mxu0 0.0
        %273 = vmatpush2.msra.mxu0 0.0
        %274 = vmatprep.subr.mxu0 0.0
        %275 = vmatpush2.msra.mxu0 0.0
        %276 = vmatprep.subr.mxu0 0.0
        %277 = vmatpush2.msra.mxu0 0.0
        %278 = vmatprep.subr.mxu0 0.0
        %279 = vmatpush2.msra.mxu0 0.0
        %280 = vmatprep.subr.mxu0 0.0
        %281 = vmatpush2.msra.mxu0 0.0
        %282 = vmatprep.subr.mxu0 0.0
        %283 = vmatpush2.msra.mxu0 0.0
        %284 = vmatprep.subr.mxu0 0.0
        %285 = vmatpush2.msra.mxu0 0.0
        %286 = vmatprep.subr.mxu0 0.0
        %287 = vmatpush2.msra.mxu0 0.0
        %288 = vmatprep.subr.mxu0 0.0
        %289 = vmatpush2.msra.mxu0 0.0
        %290 = vmatprep.subr.mxu0 0.0
        %291 = vmatpush2.msra.mxu0 0.0
        %292 = vmatprep.mubr.f32.mxu0 0.0
        %293 = vmatmul.mubr.f32.gmra.mxu0 %v222
        %v294 = vpop.f32.mrf.mxu0
        %v295 = vadd.f32 0.0, %v294
        %v296 = vpop.f32.mrf.mxu0
        %v297 = vadd.f32 0.0, %v296
        %298 = vdwg.mxu0
        %299 = vst [vmem:[%s159] sm:$0xff] %v295
        %300 = vst [vmem:[%s159 + $0x8] sm:$0xff] %v297
        %s301 = sand.u32 %s74, 1
        %s302 = scalar_lea.sflag [#allocation4], %s301
        %s303 = sand.u32 %s74, 1
        %s304 = smul.addr %s303, 16
        %s305 = scalar_lea.vmem [#allocation5], %s304
        // Predicated region
        $region33: #{tpu_custom_call.1} parent=27 // pred_check
          %p306 = pneg %p84
        $region34: #{tpu_custom_call.1} parent=27 // pred_check_branch
          %308 = sbr.rel (%p306) target = $region36
        $region35: #{tpu_custom_call.1} parent=27 // pred_region
          %s310 = ssub.s32 256, 256
          %311 = vsyncadd %s302, %s310
          %s312 = smul.addr %s19, 2
          %s313 = smul.addr %s312, 128
          %s314 = scalar_lea.hbm %s2, %s313
          %s316 = sshll.u32 %s305, 4
          %s317 = int_to_ptr.vmem [resolvable:$true] %s316
          %319 = dma.vmem_to_hbm [thread:$0]  %s317, 256, %s314, %s302
        $region36: #{tpu_custom_call.1} parent=27 // pred_fallthru
          _
      $region28: #{tpu_custom_call.1} parent=5 // pred_fallthru
        _
      %p320 = scmp.le.s32.totalorder 2, %s14
      // Predicated region
      $region37: #{tpu_custom_call.1} parent=5 // pred_check
        %p321 = pneg %p320
      $region38: #{tpu_custom_call.1} parent=5 // pred_check_branch
        %323 = sbr.rel (%p321) target = $region40
      $region39: #{tpu_custom_call.1} parent=5 // pred_region
        %s324 = ssub.s32 %s14, 2
        // Predicated region
        $region41: #{tpu_custom_call.1} parent=39 // pred_check
          %p325 = pneg %p90
        $region42: #{tpu_custom_call.1} parent=39 // pred_check_branch
          %327 = sbr.rel (%p325) target = $region44
        $region43: #{tpu_custom_call.1} parent=39 // pred_region
          %s328 = sand.u32 %s75, 1
          %s329 = scalar_lea.sflag [#allocation4], %s328
          %s330 = sand.u32 %s75, 1
          %s331 = smul.addr %s330, 16
          %s332 = scalar_lea.vmem [#allocation5], %s331
          %333 = dma.done %s329, 256
        $region44: #{tpu_custom_call.1} parent=39 // pred_fallthru
          _
      $region40: #{tpu_custom_call.1} parent=5 // pred_fallthru
        _
    $region6: #{tpu_custom_call.1} parent=1 // loop_footer
      %s18 = sadd.s32 1, %s14
    $region7: #{tpu_custom_call.1} parent=1 // loop_footer_branch
      %13 = sbr.rel target = $region3
    $region8: #{tpu_custom_call.1} parent=1 // loop_exit
      _
    %334 = vsyncpa [#allocation3], 1
    %s335 = scalar_lea.sflag [#allocation3], 1
    %336 = vsyncpa %s335, 1
    %337 = vsyncpa [#allocation4], 1
    %s338 = scalar_lea.sflag [#allocation4], 1
    %339 = vsyncpa %s338, 1

</llo_original>
